<compile_context>
chip_gen: v7x
topology: tpu7x:2x2x1
jax: 0.10.0
libtpu: 0.0.40
codegen_flags: <defaults>
</compile_context>

<pallas_src>
import random

import jax
import jax.numpy as jnp
from jax.experimental import pallas as pl
from jax.experimental.pallas import tpu as pltpu

# Lane-dense slab geometry.
_LANES = 512                      # last dim: multiple of 128 -> unmasked stores
_TARGET_BLOCK_BYTES = 4 << 20     # ~4 MiB per block per array
_ROW_ALIGN = 32                   # covers (8,128)/(16,128)/(32,128) sublane rules


def _make_oneof_kernel(transform_idx: int):
    """Returns a kernel specialized (at trace time) on the chosen transform."""

    def kernel(x_ref, o_ref):
        x = x_ref[...]
        if transform_idx == 0:
            # transform 0: affine scale + shift   (y = 2*x + 1)
            o_ref[...] = x * 2.0 + 1.0
        elif transform_idx == 1:
            # transform 1: negation               (y = -x)
            o_ref[...] = -x
        else:
            # transform 2: ReLU                   (y = max(x, 0))
            o_ref[...] = jnp.maximum(x, 0.0)

    return kernel


def my_one_of(x: jax.Array, transform_idx: int) -> jax.Array:
    """Pallas equivalent of MyOneOf([affine, negate, relu]).forward(x).

    x: any shape / float dtype (e.g. NCHW (N, C, H, W) like PyTorch).
    transform_idx: which transform was drawn host-side (0..2).
    """
    orig_shape = x.shape
    total = x.size
    flat = x.reshape(-1)

    # Target tile rows: ~4 MiB per block for this dtype, aligned to 32 sublanes.
    bytes_per_row = _LANES * jnp.dtype(x.dtype).itemsize
    target_tile_rows = max(_ROW_ALIGN,
                           (_TARGET_BLOCK_BYTES // bytes_per_row)
                           // _ROW_ALIGN * _ROW_ALIGN)

    # --- Lane-dense 2D slab: (rows, _LANES), padded as needed. -------------
    rows = pl.cdiv(total, _LANES)
    if rows > target_tile_rows:
        # Tiled case: tile rows respect the sublane rule (multiple of 32) and
        # rows are padded to a multiple of the tile so every block is full.
        tile_r = target_tile_rows
        rows_padded = pl.cdiv(rows, tile_r) * tile_r
    else:
        # Small case: one block == full array (satisfies the (8,128)-family
        # rule because block dims equal array dims).
        tile_r = rows
        rows_padded = rows

    padded_total = rows_padded * _LANES
    if padded_total != total:
        flat = jnp.pad(flat, (0, padded_total - total))
    x2d = flat.reshape(rows_padded, _LANES)

    grid = rows_padded // tile_r

    out2d = pl.pallas_call(
        _make_oneof_kernel(transform_idx),
        out_shape=jax.ShapeDtypeStruct((rows_padded, _LANES), x2d.dtype),
        grid=(grid,),
        in_specs=[pl.BlockSpec((tile_r, _LANES), lambda i: (i, 0))],
        out_specs=pl.BlockSpec((tile_r, _LANES), lambda i: (i, 0)),
        compiler_params=pltpu.CompilerParams(
            # Elementwise & independent per block -> shard across v7x's 2 TCs;
            # neutral on single-TC v5e/v6e.
            dimension_semantics=("parallel",),
        ),
    )(x2d)

    if padded_total != total:
        return out2d.reshape(-1)[:total].reshape(orig_shape)
    return out2d.reshape(orig_shape)


def _reference(x: jax.Array, transform_idx: int) -> jax.Array:
    """Pure-JAX reference for correctness check."""
    if transform_idx == 0:
        return x * 2.0 + 1.0
    elif transform_idx == 1:
        return -x
    else:
        return jnp.maximum(x, 0.0)


if __name__ == "__main__":
    # Deterministic input, NCHW like the PyTorch module would receive.
    key = jax.random.PRNGKey(0)
    x = jax.random.normal(key, (2, 4, 16, 16), dtype=jnp.float32)

    # Deterministic "random" transform choice, mirroring the host-side
    # random.randint(0, len(transforms) - 1) in MyOneOf.forward.
    random.seed(0)
    num_transforms = 3
    transform_idx = random.randint(0, num_transforms - 1)

    y = my_one_of(x, transform_idx)
    jax.block_until_ready(y)

    y_ref = _reference(x, transform_idx)
    assert y.shape == x.shape and y.dtype == x.dtype
    assert jnp.allclose(y, y_ref, atol=1e-6, rtol=1e-6)

    # Also sanity-check all three branches and a larger, tiling-exercising
    # shape (forces grid > 1 and the padded-rows path).
    x_big = jax.random.normal(jax.random.PRNGKey(1), (8, 16, 64, 64),
                              dtype=jnp.float32)
    for idx in range(num_transforms):
        for xs in (x, x_big):
            out = my_one_of(xs, idx)
            jax.block_until_ready(out)
            assert jnp.allclose(out, _reference(xs, idx), atol=1e-6, rtol=1e-6)

    print("KERNEL_OK")
</pallas_src>

<mosaic_0001>
module attributes {stable_mosaic.version = 11 : i64} {
  func.func @kernel(%arg0: i32, %arg1: memref<4x512xf32, #tpu.memory_space<vmem>>, %arg2: memref<4x512xf32, #tpu.memory_space<vmem>>) attributes {dimension_semantics = [#tpu.dimension_semantics<parallel>], iteration_bounds = array<i64: 1>, scalar_prefetch = 0 : i64, scratch_operands = 0 : i64, tpu.core_type = #tpu.core_type<tc>, window_params = [{transform_indices = @transform_0, window_bounds = array<i64: 4, 512>}, {transform_indices = @transform_1, window_bounds = array<i64: 4, 512>}]} {
    %c0 = arith.constant 0 : index
    %c0_0 = arith.constant 0 : index
    %0 = vector.load %arg1[%c0, %c0_0] : memref<4x512xf32, #tpu.memory_space<vmem>>, vector<4x512xf32>
    %cst = arith.constant 0.000000e+00 : f32
    %1 = vector.broadcast %cst : f32 to vector<4x512xf32>
    %2 = arith.subf %1, %0 : vector<4x512xf32>
    %c0_1 = arith.constant 0 : index
    %c0_2 = arith.constant 0 : index
    %3 = vector.load %arg2[%c0_1, %c0_2] : memref<4x512xf32, #tpu.memory_space<vmem>>, vector<4x512xf32>
    tpu.vector_store %arg2[%c0_1, %c0_2], %2 {strides = array<i32>} : memref<4x512xf32, #tpu.memory_space<vmem>>, vector<4x512xf32>,
    return
  }
  func.func @transform_0(%arg0: i32) -> (i32, i32) {
    %c0_i32 = arith.constant 0 : i32
    %c0_i32_0 = arith.constant 0 : i32
    return %arg0, %c0_i32 : i32, i32
  }
  func.func @transform_1(%arg0: i32) -> (i32, i32) {
    %c0_i32 = arith.constant 0 : i32
    %c0_i32_0 = arith.constant 0 : i32
    return %arg0, %c0_i32 : i32, i32
  }
}

</mosaic_0001>

<llo_original>
// kernel: tpu_custom_call.1
$region0: #{tpu_custom_call.1}
  #allocation0 [shape = 'u32[]', space=smem, size = 0x4, offset = 0x4, fixed_abs, tag = 'smem constant byte address 0x4 - core index']
  #allocation1 [shape = 'u32[144,128]{1,0:T(1,128)}', space=vmem, size = 0x12000, scoped, tag = 'internal scratch']
  %s0 = inlined_call_operand.hbm [shape: f32[4,512], index: 0, kind: input, shape index: {}]
  %s1 = inlined_call_operand.hbm [shape: f32[4,512], index: 1, kind: output, shape index: {}]
  %s2 = sld [smem:[#allocation0]]
  $region18: #{tpu_custom_call.1} parent=0
    _
  %s4 = ssub.s32 1, %s2
  %s5 = scalar_select 0, %s4, %s2
  $region1: #{tpu_custom_call.1} parent=0
    #allocation2 [shape = 'u8[8192]{0}', space=vmem, size = 0x2000, scoped, tag = 'input window, operand 0, single buffered']
    #allocation3 [shape = 's32[1]{0}', space=sflag, size = 0x4, scoped, tag = 'scoped memory for tpu_custom_call.1']
    #allocation4 [shape = 's32[1]{0}', space=sflag, size = 0x4, scoped, tag = 'scoped memory for tpu_custom_call.1']
    #allocation5 [shape = 'u8[8192]{0}', space=vmem, size = 0x2000, scoped, tag = 'output window, operand 0, single buffered']
    %6 = vsyncpa [#allocation3], 0
    %7 = vsyncpa [#allocation4], 0
    // Predicated region
    $region2: #{tpu_custom_call.1} parent=1 // pred_check
      _
    $region3: #{tpu_custom_call.1} parent=1 // pred_check_branch
      %9 = sbr.rel (0) target = $region5
    $region4: #{tpu_custom_call.1} parent=1 // pred_region
      %s11 = ssub.s32 256, 256
      %12 = vsyncadd [#allocation3], %s11
      %s14 = sshll.u32 [#allocation2], 4
      %s15 = int_to_ptr.vmem [resolvable:$true] %s14
      %17 = dma.hbm_to_vmem [thread:$0]  %s0, 256, %s15, [#allocation3]
    $region5: #{tpu_custom_call.1} parent=1 // pred_fallthru
      _
    // Predicated region
    $region6: #{tpu_custom_call.1} parent=1 // pred_check
      _
    $region7: #{tpu_custom_call.1} parent=1 // pred_check_branch
      %19 = sbr.rel (0) target = $region9
    $region8: #{tpu_custom_call.1} parent=1 // pred_region
      %20 = dma.done [#allocation3], 256
    $region9: #{tpu_custom_call.1} parent=1 // pred_fallthru
      _
    %v21 = vld [vmem:[#allocation2] sm:$0xff]
    %v22 = vld [vmem:[#allocation2 + $0x8] sm:$0xff]
    %v23 = vsub.f32 0.0, %v21
    %v24 = vsub.f32 0.0, %v22
    %25 = vst [vmem:[#allocation5] sm:$0xff] %v23
    %26 = vst [vmem:[#allocation5 + $0x8] sm:$0xff] %v24
    // Predicated region
    $region10: #{tpu_custom_call.1} parent=1 // pred_check
      _
    $region11: #{tpu_custom_call.1} parent=1 // pred_check_branch
      %28 = sbr.rel (0) target = $region13
    $region12: #{tpu_custom_call.1} parent=1 // pred_region
      %s30 = ssub.s32 256, 256
      %31 = vsyncadd [#allocation4], %s30
      %s33 = sshll.u32 [#allocation5], 4
      %s34 = int_to_ptr.vmem [resolvable:$true] %s33
      %36 = dma.vmem_to_hbm [thread:$0]  %s34, 256, %s1, [#allocation4]
    $region13: #{tpu_custom_call.1} parent=1 // pred_fallthru
      _
    // Predicated region
    $region14: #{tpu_custom_call.1} parent=1 // pred_check
      _
    $region15: #{tpu_custom_call.1} parent=1 // pred_check_branch
      %38 = sbr.rel (0) target = $region17
    $region16: #{tpu_custom_call.1} parent=1 // pred_region
      %39 = dma.done [#allocation4], 256
    $region17: #{tpu_custom_call.1} parent=1 // pred_fallthru
      _
    %40 = vsyncpa [#allocation3], 1
    %41 = vsyncpa [#allocation4], 1

</llo_original>
